<compile_context>
chip_gen: v6e
topology: v6e:2x2x1
jax: 0.10.0
libtpu: 0.0.40
codegen_flags: <defaults>
</compile_context>

<pallas_src>
import functools

import jax
import jax.numpy as jnp
from jax.experimental import pallas as pl
from jax.experimental.pallas import tpu as pltpu

# Module hyper-parameters (from the PyTorch source / its usual instantiation).
N_EMBED = 384            # n_embed
HEAD_SIZE = 64           # head_size passed to Head(head_size) (= n_embed // 6)
B = 2                    # batch
T = 8                    # sequence length

# Lane-aligned packing layout for the fused QKV weight: each projection gets
# its own 128-lane block (zero-padded from head_size to 128), so in-kernel
# q/k/v slices start at multiples of 128 lanes.  The kernel's slice offsets
# below MUST stay in lockstep with this packing order (q, k, v).
LANE = 128
Q_BLK, K_BLK, V_BLK = 0, 1, 2


def pack_qkv_weights(wq, wk, wv):
    """Pack + pad + cast the projection weights ONCE at parameter-load time.

    wq/wk/wv: (C, head_size) f32, already transposed from PyTorch's
    nn.Linear weight (hs, C), so the kernel computes x @ W == x @ weight.T.
    Returns a (C, 3*128) bfloat16 matrix with each projection in its own
    128-lane block (remaining columns are zero).
    """
    C, hs = wq.shape
    assert hs <= LANE
    wqkv = jnp.zeros((C, 3 * LANE), jnp.float32)
    wqkv = wqkv.at[:, Q_BLK * LANE:Q_BLK * LANE + hs].set(wq)
    wqkv = wqkv.at[:, K_BLK * LANE:K_BLK * LANE + hs].set(wk)
    wqkv = wqkv.at[:, V_BLK * LANE:V_BLK * LANE + hs].set(wv)
    return wqkv.astype(jnp.bfloat16)


# ---------------------------------------------------------------------------
# Fused kernel: packed QKV projection (one MXU matmul) + batched attention.
# Single invocation (no grid); all operands live whole in VMEM.
# ---------------------------------------------------------------------------
def _head_kernel(x_ref, wqkv_ref, o_ref, *, batch, seq_len, head_size):
    # x_ref: (B*T, C) bf16 | wqkv_ref: (C, 3*128) bf16 | o_ref: (B, T, hs) f32
    C = x_ref.shape[-1]

    # One MXU matmul for q, k, v of every row in the batch (bf16 operands,
    # f32 accumulation).  Padded weight columns are zero, so padded q/k/v
    # lanes are exactly zero and drop out of the contractions below.
    qkv = jnp.dot(x_ref[...], wqkv_ref[...],
                  preferred_element_type=jnp.float32)          # (B*T, 3*128)
    qkv = qkv.reshape(batch, seq_len, 3 * LANE)                # (B, T, 3*128)

    # Lane-aligned static slices (offsets are multiples of 128).
    q = qkv[:, :, Q_BLK * LANE:(Q_BLK + 1) * LANE]             # (B, T, 128)
    k = qkv[:, :, K_BLK * LANE:(K_BLK + 1) * LANE]
    v = qkv[:, :, V_BLK * LANE:(V_BLK + 1) * LANE]

    # NOTE: the PyTorch Head scales by C**-0.5 with C = n_embed (not head_size).
    scale = jnp.float32(C) ** -0.5

    # Batched q @ k^T: contract the last axis of both operands (no explicit
    # k transpose materialized); bf16 operands, f32 accumulation.
    s = jnp.einsum("bqd,bkd->bqk",
                   q.astype(jnp.bfloat16), k.astype(jnp.bfloat16),
                   preferred_element_type=jnp.float32) * scale  # (B, T, T)

    # Numerically-stable softmax along the last dim.  approx reciprocal runs
    # on the EUP slot; rows sum to 1 to ~2e-4 — fine for eval.
    s = s - jnp.max(s, axis=-1, keepdims=True)
    p = jnp.exp(s)
    p = p * pl.reciprocal(jnp.sum(p, axis=-1, keepdims=True), approx=True)

    # Dropout on attention weights: identity in eval mode.
    out = jnp.einsum("bqk,bkd->bqd",
                     p.astype(jnp.bfloat16), v.astype(jnp.bfloat16),
                     preferred_element_type=jnp.float32)        # (B, T, 128)

    # Only the first head_size lanes of v (hence of out) carry real data.
    o_ref[...] = out[:, :, :head_size]


@functools.partial(jax.jit, static_argnames=("head_size",))
def head_forward(x, wqkv, head_size=HEAD_SIZE):
    """Head.forward (eval mode).

    x:    (B, T, C) float32
    wqkv: (C, 3*128) bfloat16 — pre-packed/pre-cast via pack_qkv_weights().
    returns: (B, T, head_size) float32
    """
    Bb, Tt, C = x.shape
    # Free, contiguous reshape; cast activations to bf16 for the MXU dot.
    x2 = x.reshape(Bb * Tt, C).astype(jnp.bfloat16)

    kern = functools.partial(_head_kernel, batch=Bb, seq_len=Tt,
                             head_size=head_size)
    return pl.pallas_call(
        kern,
        out_shape=jax.ShapeDtypeStruct((Bb, Tt, head_size), jnp.float32),
        in_specs=[
            pl.BlockSpec(memory_space=pltpu.MemorySpace.VMEM),   # x    (whole)
            pl.BlockSpec(memory_space=pltpu.MemorySpace.VMEM),   # Wqkv (whole)
        ],
        out_specs=pl.BlockSpec(memory_space=pltpu.MemorySpace.VMEM),
    )(x2, wqkv)


def _reference(x, wq, wk, wv):
    """Plain-JAX f32 reference of Head.forward (eval mode)."""
    C = x.shape[-1]
    q = x @ wq
    k = x @ wk
    v = x @ wv
    s = jnp.einsum("btd,bsd->bts", q, k) * (jnp.float32(C) ** -0.5)
    p = jax.nn.softmax(s, axis=-1)
    return jnp.einsum("bts,bsd->btd", p, v)


if __name__ == "__main__":
    key = jax.random.PRNGKey(0)
    kx, kq, kk, kv = jax.random.split(key, 4)

    x = jax.random.normal(kx, (B, T, N_EMBED), dtype=jnp.float32)
    wq = jax.random.normal(kq, (N_EMBED, HEAD_SIZE), jnp.float32) * 0.02
    wk = jax.random.normal(kk, (N_EMBED, HEAD_SIZE), jnp.float32) * 0.02
    wv = jax.random.normal(kv, (N_EMBED, HEAD_SIZE), jnp.float32) * 0.02

    # Done once at parameter-load time, NOT per forward call.
    wqkv_packed = jax.block_until_ready(pack_qkv_weights(wq, wk, wv))

    out = head_forward(x, wqkv_packed, head_size=HEAD_SIZE)
    out = jax.block_until_ready(out)

    ref = _reference(x, wq, wk, wv)
    assert out.shape == (B, T, HEAD_SIZE)
    # bf16 operands on the MXU (f32 accumulation) + approx EUP reciprocal give
    # ~1e-3-level absolute error vs the f32 reference; 2e-2 tolerance is still
    # far tighter than any real bug (e.g. a q/k swap changes outputs by ~0.1+).
    max_err = jnp.max(jnp.abs(out - ref))
    assert jnp.allclose(out, ref, rtol=2e-2, atol=2e-2), (
        f"mismatch vs reference (max abs err = {max_err})")

    print("KERNEL_OK")
</pallas_src>

<mosaic_0001>
module attributes {stable_mosaic.version = 11 : i64} {
  func.func @_head_kernel(%arg0: memref<16x384xbf16, #tpu.memory_space<vmem>>, %arg1: memref<384x384xbf16, #tpu.memory_space<vmem>>, %arg2: memref<2x8x64xf32, #tpu.memory_space<vmem>>) attributes {dimension_semantics = [], scalar_prefetch = 0 : i64, scratch_operands = 0 : i64, tpu.core_type = #tpu.core_type<tc>} {
    %c0 = arith.constant 0 : index
    %c0_0 = arith.constant 0 : index
    %0 = vector.load %arg0[%c0, %c0_0] : memref<16x384xbf16, #tpu.memory_space<vmem>>, vector<16x384xbf16>
    %c0_1 = arith.constant 0 : index
    %c0_2 = arith.constant 0 : index
    %1 = vector.load %arg1[%c0_1, %c0_2] : memref<384x384xbf16, #tpu.memory_space<vmem>>, vector<384x384xbf16>
    %cst = arith.constant dense<0.000000e+00> : vector<16x384xf32>
    %2 = tpu.matmul %0, %1, %cst {dimension_numbers = #tpu.dot_dimension_numbers<[1], [0], [0], [1], [0, 0, 1, 1], [], []>} : vector<16x384xbf16>, vector<384x384xbf16>, vector<16x384xf32> -> vector<16x384xf32>
    %3 = vector.shape_cast %2 : vector<16x384xf32> to vector<2x8x384xf32>
    %4 = vector.extract_strided_slice %3 {offsets = [0, 0, 0], sizes = [2, 8, 128], strides = [1, 1, 1]} : vector<2x8x384xf32> to vector<2x8x128xf32>
    %5 = vector.extract_strided_slice %3 {offsets = [0, 0, 128], sizes = [2, 8, 128], strides = [1, 1, 1]} : vector<2x8x384xf32> to vector<2x8x128xf32>
    %6 = vector.extract_strided_slice %3 {offsets = [0, 0, 256], sizes = [2, 8, 128], strides = [1, 1, 1]} : vector<2x8x384xf32> to vector<2x8x128xf32>
    %cst_3 = arith.constant 3.840000e+02 : f32
    %cst_4 = arith.constant -5.000000e-01 : f32
    %7 = math.powf %cst_3, %cst_4 : f32
    %8 = arith.truncf %4 : vector<2x8x128xf32> to vector<2x8x128xbf16>
    %9 = arith.truncf %5 : vector<2x8x128xf32> to vector<2x8x128xbf16>
    "tpu.trace_start"() <{level = 10 : i32, message = "bqd,bkd->bqk"}> : () -> ()
    %cst_5 = arith.constant dense<0.000000e+00> : vector<2x8x8xf32>
    %10 = tpu.matmul %8, %9, %cst_5 {dimension_numbers = #tpu.dot_dimension_numbers<[2], [2], [1], [1], [0, 0, 0, 1, 1, 1], [0], [0]>} : vector<2x8x128xbf16>, vector<2x8x128xbf16>, vector<2x8x8xf32> -> vector<2x8x8xf32>
    "tpu.trace_stop"() : () -> ()
    %11 = vector.broadcast %7 : f32 to vector<2x8x8xf32>
    %12 = arith.mulf %10, %11 : vector<2x8x8xf32>
    %cst_6 = arith.constant dense<0xFF800000> : vector<2x8xf32>
    %13 = vector.multi_reduction <maximumf>, %12, %cst_6 [2] : vector<2x8x8xf32> to vector<2x8xf32>
    %14 = vector.shape_cast %13 : vector<2x8xf32> to vector<2x8x1xf32>
    %15 = vector.broadcast %14 : vector<2x8x1xf32> to vector<2x8x8xf32>
    %16 = arith.subf %12, %15 : vector<2x8x8xf32>
    %17 = math.exp %16 : vector<2x8x8xf32>
    %cst_7 = arith.constant dense<0.000000e+00> : vector<2x8xf32>
    %18 = vector.multi_reduction <add>, %17, %cst_7 [2] : vector<2x8x8xf32> to vector<2x8xf32>
    %19 = vector.shape_cast %18 : vector<2x8xf32> to vector<2x8x1xf32>
    %20 = tpu.reciprocal %19 {approx = true} : vector<2x8x1xf32> -> vector<2x8x1xf32>
    %21 = vector.broadcast %20 : vector<2x8x1xf32> to vector<2x8x8xf32>
    %22 = arith.mulf %17, %21 : vector<2x8x8xf32>
    %23 = arith.truncf %22 : vector<2x8x8xf32> to vector<2x8x8xbf16>
    %24 = arith.truncf %6 : vector<2x8x128xf32> to vector<2x8x128xbf16>
    "tpu.trace_start"() <{level = 10 : i32, message = "bqk,bkd->bqd"}> : () -> ()
    %cst_8 = arith.constant dense<0.000000e+00> : vector<2x8x128xf32>
    %25 = tpu.matmul %23, %24, %cst_8 {dimension_numbers = #tpu.dot_dimension_numbers<[2], [1], [1], [2], [0, 0, 0, 1, 1, 2], [0], [0]>} : vector<2x8x8xbf16>, vector<2x8x128xbf16>, vector<2x8x128xf32> -> vector<2x8x128xf32>
    "tpu.trace_stop"() : () -> ()
    %26 = vector.extract_strided_slice %25 {offsets = [0, 0, 0], sizes = [2, 8, 64], strides = [1, 1, 1]} : vector<2x8x128xf32> to vector<2x8x64xf32>
    %c0_9 = arith.constant 0 : index
    %c0_10 = arith.constant 0 : index
    %c0_11 = arith.constant 0 : index
    %27 = vector.load %arg2[%c0_9, %c0_10, %c0_11] : memref<2x8x64xf32, #tpu.memory_space<vmem>>, vector<2x8x64xf32>
    tpu.vector_store %arg2[%c0_9, %c0_10, %c0_11], %26 {strides = array<i32>} : memref<2x8x64xf32, #tpu.memory_space<vmem>>, vector<2x8x64xf32>,
    return
  }
}

</mosaic_0001>

<llo_original>
// kernel: head_forward.1
$region0: #{head_forward.1}
  #allocation0 [shape = 'u32[]', space=smem, size = 0x4, offset = 0x4, fixed_abs, tag = 'smem constant byte address 0x4 - core index']
  #allocation1 [shape = 'u32[144,128]{1,0:T(1,128)}', space=vmem, size = 0x12000, scoped, tag = 'internal scratch']
  %s0 = inlined_call_operand.vmem [shape: bf16[16,384], index: 0, kind: input, shape index: {}]
  %s1 = inlined_call_operand.hbm [shape: bf16[384,384], index: 1, kind: input, shape index: {}]
  %s2 = inlined_call_operand.hbm [shape: f32[2,8,64], index: 2, kind: output, shape index: {}]
  %s3 = sld [smem:[#allocation0]]
  $region22: #{head_forward.1} parent=0
    _
  %s5 = ssub.s32 1, %s3
  %s6 = scalar_select 0, %s5, %s3
  $region1: #{head_forward.1} parent=0
    #allocation2 [shape = 'u8[294912]{0}', space=vmem, size = 0x48000, scoped, tag = 'input window, operand 1, single buffered']
    #allocation3 [shape = 's32[1]{0}', space=sflag, size = 0x4, scoped, tag = 'scoped memory for head_forward.1']
    #allocation4 [shape = 's32[1]{0}', space=sflag, size = 0x4, scoped, tag = 'scoped memory for head_forward.1']
    #allocation5 [shape = 'u8[8192]{0}', space=vmem, size = 0x2000, scoped, tag = 'output window, operand 0, single buffered']
    %7 = vsyncpa [#allocation3], 0
    %8 = vsyncpa [#allocation4], 0
    // Predicated region
    $region2: #{head_forward.1} parent=1 // pred_check
      _
    $region3: #{head_forward.1} parent=1 // pred_check_branch
      %10 = sbr.rel (0) target = $region5
    $region4: #{head_forward.1} parent=1 // pred_region
      _
    $region5: #{head_forward.1} parent=1 // pred_fallthru
      _
    // Predicated region
    $region6: #{head_forward.1} parent=1 // pred_check
      _
    $region7: #{head_forward.1} parent=1 // pred_check_branch
      %12 = sbr.rel (0) target = $region9
    $region8: #{head_forward.1} parent=1 // pred_region
      %s14 = ssub.s32 9216, 9216
      %15 = vsyncadd [#allocation3], %s14
      %s16 = sshll.u32 [#allocation2], 4
      %s17 = int_to_ptr.vmem [resolvable:$true] %s16
      %22 = dma.hbm_to_vmem [thread:$0]  %s1, 9216, %s17, [#allocation3], 192, 192, 12
    $region9: #{head_forward.1} parent=1 // pred_fallthru
      _
    // Predicated region
    $region10: #{head_forward.1} parent=1 // pred_check
      _
    $region11: #{head_forward.1} parent=1 // pred_check_branch
      %24 = sbr.rel (0) target = $region13
    $region12: #{head_forward.1} parent=1 // pred_region
      %25 = dma.done [#allocation3], 9216
    $region13: #{head_forward.1} parent=1 // pred_fallthru
      _
    %v27 = vld [vmem:[%s0] sm:$0xff]
    %v28 = vld [vmem:[%s0 + $0x8] sm:$0xf]
    %v29 = vld [vmem:[%s0 + $0xc] sm:$0xff]
    %v30 = vld [vmem:[%s0 + $0x14] sm:$0xf]
    %v31 = vld [vmem:[#allocation2] sm:$0xff]
    %v32 = vld [vmem:[#allocation2 + $0x8] sm:$0xf]
    %v33 = vld [vmem:[#allocation2 + $0xc] sm:$0xff]
    %v34 = vld [vmem:[#allocation2 + $0x14] sm:$0xf]
    %v35 = vld [vmem:[#allocation2 + $0x18] sm:$0xff]
    %v36 = vld [vmem:[#allocation2 + $0x20] sm:$0xf]
    %v37 = vld [vmem:[#allocation2 + $0x24] sm:$0xff]
    %v38 = vld [vmem:[#allocation2 + $0x2c] sm:$0xf]
    %v39 = vld [vmem:[#allocation2 + $0x30] sm:$0xff]
    %v40 = vld [vmem:[#allocation2 + $0x38] sm:$0xf]
    %v41 = vld [vmem:[#allocation2 + $0x3c] sm:$0xff]
    %v42 = vld [vmem:[#allocation2 + $0x44] sm:$0xf]
    %v43 = vld [vmem:[#allocation2 + $0x48] sm:$0xff]
    %v44 = vld [vmem:[#allocation2 + $0x50] sm:$0xf]
    %v45 = vld [vmem:[#allocation2 + $0x54] sm:$0xff]
    %v46 = vld [vmem:[#allocation2 + $0x5c] sm:$0xf]
    %v47 = vld [vmem:[#allocation2 + $0x60] sm:$0xff]
    %v48 = vld [vmem:[#allocation2 + $0x68] sm:$0xf]
    %v49 = vld [vmem:[#allocation2 + $0x6c] sm:$0xff]
    %v50 = vld [vmem:[#allocation2 + $0x74] sm:$0xf]
    %v51 = vld [vmem:[#allocation2 + $0x78] sm:$0xff]
    %v52 = vld [vmem:[#allocation2 + $0x80] sm:$0xf]
    %v53 = vld [vmem:[#allocation2 + $0x84] sm:$0xff]
    %v54 = vld [vmem:[#allocation2 + $0x8c] sm:$0xf]
    %v55 = vld [vmem:[#allocation2 + $0x90] sm:$0xff]
    %v56 = vld [vmem:[#allocation2 + $0x98] sm:$0xf]
    %v57 = vld [vmem:[#allocation2 + $0x9c] sm:$0xff]
    %v58 = vld [vmem:[#allocation2 + $0xa4] sm:$0xf]
    %v59 = vld [vmem:[#allocation2 + $0xa8] sm:$0xff]
    %v60 = vld [vmem:[#allocation2 + $0xb0] sm:$0xf]
    %v61 = vld [vmem:[#allocation2 + $0xb4] sm:$0xff]
    %v62 = vld [vmem:[#allocation2 + $0xbc] sm:$0xf]
    %v63 = vld [vmem:[#allocation2 + $0xc0] sm:$0xff]
    %v64 = vld [vmem:[#allocation2 + $0xc8] sm:$0xf]
    %v65 = vld [vmem:[#allocation2 + $0xcc] sm:$0xff]
    %v66 = vld [vmem:[#allocation2 + $0xd4] sm:$0xf]
    %v67 = vld [vmem:[#allocation2 + $0xd8] sm:$0xff]
    %v68 = vld [vmem:[#allocation2 + $0xe0] sm:$0xf]
    %v69 = vld [vmem:[#allocation2 + $0xe4] sm:$0xff]
    %v70 = vld [vmem:[#allocation2 + $0xec] sm:$0xf]
    %v71 = vld [vmem:[#allocation2 + $0xf0] sm:$0xff]
    %v72 = vld [vmem:[#allocation2 + $0xf8] sm:$0xf]
    %v73 = vld [vmem:[#allocation2 + $0xfc] sm:$0xff]
    %v74 = vld [vmem:[#allocation2 + $0x104] sm:$0xf]
    %v75 = vld [vmem:[#allocation2 + $0x108] sm:$0xff]
    %v76 = vld [vmem:[#allocation2 + $0x110] sm:$0xf]
    %v77 = vld [vmem:[#allocation2 + $0x114] sm:$0xff]
    %v78 = vld [vmem:[#allocation2 + $0x11c] sm:$0xf]
    %v79 = vld [vmem:[#allocation2 + $0x120] sm:$0xff]
    %v80 = vld [vmem:[#allocation2 + $0x128] sm:$0xf]
    %v81 = vld [vmem:[#allocation2 + $0x12c] sm:$0xff]
    %v82 = vld [vmem:[#allocation2 + $0x134] sm:$0xf]
    %v83 = vld [vmem:[#allocation2 + $0x138] sm:$0xff]
    %v84 = vld [vmem:[#allocation2 + $0x140] sm:$0xf]
    %v85 = vld [vmem:[#allocation2 + $0x144] sm:$0xff]
    %v86 = vld [vmem:[#allocation2 + $0x14c] sm:$0xf]
    %v87 = vld [vmem:[#allocation2 + $0x150] sm:$0xff]
    %v88 = vld [vmem:[#allocation2 + $0x158] sm:$0xf]
    %v89 = vld [vmem:[#allocation2 + $0x15c] sm:$0xff]
    %v90 = vld [vmem:[#allocation2 + $0x164] sm:$0xf]
    %v91 = vld [vmem:[#allocation2 + $0x168] sm:$0xff]
    %v92 = vld [vmem:[#allocation2 + $0x170] sm:$0xf]
    %v93 = vld [vmem:[#allocation2 + $0x174] sm:$0xff]
    %v94 = vld [vmem:[#allocation2 + $0x17c] sm:$0xf]
    %v95 = vld [vmem:[#allocation2 + $0x180] sm:$0xff]
    %v96 = vld [vmem:[#allocation2 + $0x188] sm:$0xf]
    %v97 = vld [vmem:[#allocation2 + $0x18c] sm:$0xff]
    %v98 = vld [vmem:[#allocation2 + $0x194] sm:$0xf]
    %v99 = vld [vmem:[#allocation2 + $0x198] sm:$0xff]
    %v100 = vld [vmem:[#allocation2 + $0x1a0] sm:$0xf]
    %v101 = vld [vmem:[#allocation2 + $0x1a4] sm:$0xff]
    %v102 = vld [vmem:[#allocation2 + $0x1ac] sm:$0xf]
    %v103 = vld [vmem:[#allocation2 + $0x1b0] sm:$0xff]
    %v104 = vld [vmem:[#allocation2 + $0x1b8] sm:$0xf]
    %v105 = vld [vmem:[#allocation2 + $0x1bc] sm:$0xff]
    %v106 = vld [vmem:[#allocation2 + $0x1c4] sm:$0xf]
    %v107 = vld [vmem:[#allocation2 + $0x1c8] sm:$0xff]
    %v108 = vld [vmem:[#allocation2 + $0x1d0] sm:$0xf]
    %v109 = vld [vmem:[#allocation2 + $0x1d4] sm:$0xff]
    %v110 = vld [vmem:[#allocation2 + $0x1dc] sm:$0xf]
    %v111 = vld [vmem:[#allocation2 + $0x1e0] sm:$0xff]
    %v112 = vld [vmem:[#allocation2 + $0x1e8] sm:$0xf]
    %v113 = vld [vmem:[#allocation2 + $0x1ec] sm:$0xff]
    %v114 = vld [vmem:[#allocation2 + $0x1f4] sm:$0xf]
    %v115 = vld [vmem:[#allocation2 + $0x1f8] sm:$0xff]
    %v116 = vld [vmem:[#allocation2 + $0x200] sm:$0xf]
    %v117 = vld [vmem:[#allocation2 + $0x204] sm:$0xff]
    %v118 = vld [vmem:[#allocation2 + $0x20c] sm:$0xf]
    %v119 = vld [vmem:[#allocation2 + $0x210] sm:$0xff]
    %v120 = vld [vmem:[#allocation2 + $0x218] sm:$0xf]
    %v121 = vld [vmem:[#allocation2 + $0x21c] sm:$0xff]
    %v122 = vld [vmem:[#allocation2 + $0x224] sm:$0xf]
    %v123 = vld [vmem:[#allocation2 + $0x228] sm:$0xff]
    %v124 = vld [vmem:[#allocation2 + $0x230] sm:$0xf]
    %v125 = vld [vmem:[#allocation2 + $0x234] sm:$0xff]
    %v126 = vld [vmem:[#allocation2 + $0x23c] sm:$0xf]
    %v131 = vunpack.c.l.b16 %v27
    %v132 = vunpack.c.h.b16 %v27
    %v133 = vunpack.c.l.b16 %v28
    %v134 = vunpack.c.l.b16 %v29
    %v135 = vunpack.c.h.b16 %v29
    %v136 = vunpack.c.l.b16 %v30
    %v137 = vpack.c.b16 %v134, %v131
    %v138 = vpack.c.b16 %v135, %v132
    %v139 = vpack.c.b16 %v136, %v133
    %v239 = vunpack.c.l.b16 %v31
    %v240 = vunpack.c.h.b16 %v31
    %v241 = vunpack.c.l.b16 %v32
    %v242 = vunpack.c.l.b16 %v33
    %v243 = vunpack.c.h.b16 %v33
    %v244 = vunpack.c.l.b16 %v34
    %v245 = vunpack.c.l.b16 %v35
    %v246 = vunpack.c.h.b16 %v35
    %v247 = vunpack.c.l.b16 %v36
    %v248 = vunpack.c.l.b16 %v37
    %v249 = vunpack.c.h.b16 %v37
    %v250 = vunpack.c.l.b16 %v38
    %v251 = vunpack.c.l.b16 %v39
    %v252 = vunpack.c.h.b16 %v39
    %v253 = vunpack.c.l.b16 %v40
    %v254 = vunpack.c.l.b16 %v41
    %v255 = vunpack.c.h.b16 %v41
    %v256 = vunpack.c.l.b16 %v42
    %v257 = vunpack.c.l.b16 %v43
    %v258 = vunpack.c.h.b16 %v43
    %v259 = vunpack.c.l.b16 %v44
    %v260 = vunpack.c.l.b16 %v45
    %v261 = vunpack.c.h.b16 %v45
    %v262 = vunpack.c.l.b16 %v46
    %v263 = vunpack.c.l.b16 %v47
    %v264 = vunpack.c.h.b16 %v47
    %v265 = vunpack.c.l.b16 %v48
    %v266 = vunpack.c.l.b16 %v49
    %v267 = vunpack.c.h.b16 %v49
    %v268 = vunpack.c.l.b16 %v50
    %v269 = vunpack.c.l.b16 %v51
    %v270 = vunpack.c.h.b16 %v51
    %v271 = vunpack.c.l.b16 %v52
    %v272 = vunpack.c.l.b16 %v53
    %v273 = vunpack.c.h.b16 %v53
    %v274 = vunpack.c.l.b16 %v54
    %v275 = vunpack.c.l.b16 %v55
    %v276 = vunpack.c.h.b16 %v55
    %v277 = vunpack.c.l.b16 %v56
    %v278 = vunpack.c.l.b16 %v57
    %v279 = vunpack.c.h.b16 %v57
    %v280 = vunpack.c.l.b16 %v58
    %v281 = vunpack.c.l.b16 %v59
    %v282 = vunpack.c.h.b16 %v59
    %v283 = vunpack.c.l.b16 %v60
    %v284 = vunpack.c.l.b16 %v61
    %v285 = vunpack.c.h.b16 %v61
    %v286 = vunpack.c.l.b16 %v62
    %v287 = vunpack.c.l.b16 %v63
    %v288 = vunpack.c.h.b16 %v63
    %v289 = vunpack.c.l.b16 %v64
    %v290 = vunpack.c.l.b16 %v65
    %v291 = vunpack.c.h.b16 %v65
    %v292 = vunpack.c.l.b16 %v66
    %v293 = vunpack.c.l.b16 %v67
    %v294 = vunpack.c.h.b16 %v67
    %v295 = vunpack.c.l.b16 %v68
    %v296 = vunpack.c.l.b16 %v69
    %v297 = vunpack.c.h.b16 %v69
    %v298 = vunpack.c.l.b16 %v70
    %v299 = vunpack.c.l.b16 %v71
    %v300 = vunpack.c.h.b16 %v71
    %v301 = vunpack.c.l.b16 %v72
    %v302 = vunpack.c.l.b16 %v73
    %v303 = vunpack.c.h.b16 %v73
    %v304 = vunpack.c.l.b16 %v74
    %v305 = vunpack.c.l.b16 %v75
    %v306 = vunpack.c.h.b16 %v75
    %v307 = vunpack.c.l.b16 %v76
    %v308 = vunpack.c.l.b16 %v77
    %v309 = vunpack.c.h.b16 %v77
    %v310 = vunpack.c.l.b16 %v78
    %v311 = vunpack.c.l.b16 %v79
    %v312 = vunpack.c.h.b16 %v79
    %v313 = vunpack.c.l.b16 %v80
    %v314 = vunpack.c.l.b16 %v81
    %v315 = vunpack.c.h.b16 %v81
    %v316 = vunpack.c.l.b16 %v82
    %v317 = vunpack.c.l.b16 %v83
    %v318 = vunpack.c.h.b16 %v83
    %v319 = vunpack.c.l.b16 %v84
    %v320 = vunpack.c.l.b16 %v85
    %v321 = vunpack.c.h.b16 %v85
    %v322 = vunpack.c.l.b16 %v86
    %v323 = vunpack.c.l.b16 %v87
    %v324 = vunpack.c.h.b16 %v87
    %v325 = vunpack.c.l.b16 %v88
    %v326 = vunpack.c.l.b16 %v89
    %v327 = vunpack.c.h.b16 %v89
    %v328 = vunpack.c.l.b16 %v90
    %v329 = vunpack.c.l.b16 %v91
    %v330 = vunpack.c.h.b16 %v91
    %v331 = vunpack.c.l.b16 %v92
    %v332 = vunpack.c.l.b16 %v93
    %v333 = vunpack.c.h.b16 %v93
    %v334 = vunpack.c.l.b16 %v94
    %v335 = vunpack.c.l.b16 %v95
    %v336 = vunpack.c.h.b16 %v95
    %v337 = vunpack.c.l.b16 %v96
    %v338 = vunpack.c.l.b16 %v97
    %v339 = vunpack.c.h.b16 %v97
    %v340 = vunpack.c.l.b16 %v98
    %v341 = vunpack.c.l.b16 %v99
    %v342 = vunpack.c.h.b16 %v99
    %v343 = vunpack.c.l.b16 %v100
    %v344 = vunpack.c.l.b16 %v101
    %v345 = vunpack.c.h.b16 %v101
    %v346 = vunpack.c.l.b16 %v102
    %v347 = vunpack.c.l.b16 %v103
    %v348 = vunpack.c.h.b16 %v103
    %v349 = vunpack.c.l.b16 %v104
    %v350 = vunpack.c.l.b16 %v105
    %v351 = vunpack.c.h.b16 %v105
    %v352 = vunpack.c.l.b16 %v106
    %v353 = vunpack.c.l.b16 %v107
    %v354 = vunpack.c.h.b16 %v107
    %v355 = vunpack.c.l.b16 %v108
    %v356 = vunpack.c.l.b16 %v109
    %v357 = vunpack.c.h.b16 %v109
    %v358 = vunpack.c.l.b16 %v110
    %v359 = vunpack.c.l.b16 %v111
    %v360 = vunpack.c.h.b16 %v111
    %v361 = vunpack.c.l.b16 %v112
    %v362 = vunpack.c.l.b16 %v113
    %v363 = vunpack.c.h.b16 %v113
    %v364 = vunpack.c.l.b16 %v114
    %v365 = vunpack.c.l.b16 %v115
    %v366 = vunpack.c.h.b16 %v115
    %v367 = vunpack.c.l.b16 %v116
    %v368 = vunpack.c.l.b16 %v117
    %v369 = vunpack.c.h.b16 %v117
    %v370 = vunpack.c.l.b16 %v118
    %v371 = vunpack.c.l.b16 %v119
    %v372 = vunpack.c.h.b16 %v119
    %v373 = vunpack.c.l.b16 %v120
    %v374 = vunpack.c.l.b16 %v121
    %v375 = vunpack.c.h.b16 %v121
    %v376 = vunpack.c.l.b16 %v122
    %v377 = vunpack.c.l.b16 %v123
    %v378 = vunpack.c.h.b16 %v123
    %v379 = vunpack.c.l.b16 %v124
    %v380 = vunpack.c.l.b16 %v125
    %v381 = vunpack.c.h.b16 %v125
    %v382 = vunpack.c.l.b16 %v126
    %v383 = vpack.c.b16 %v242, %v239
    %v384 = vpack.c.b16 %v243, %v240
    %v385 = vpack.c.b16 %v244, %v241
    %v386 = vpack.c.b16 %v248, %v245
    %v387 = vpack.c.b16 %v249, %v246
    %v388 = vpack.c.b16 %v250, %v247
    %v389 = vpack.c.b16 %v254, %v251
    %v390 = vpack.c.b16 %v255, %v252
    %v391 = vpack.c.b16 %v256, %v253
    %v392 = vpack.c.b16 %v260, %v257
    %v393 = vpack.c.b16 %v261, %v258
    %v394 = vpack.c.b16 %v262, %v259
    %v395 = vpack.c.b16 %v266, %v263
    %v396 = vpack.c.b16 %v267, %v264
    %v397 = vpack.c.b16 %v268, %v265
    %v398 = vpack.c.b16 %v272, %v269
    %v399 = vpack.c.b16 %v273, %v270
    %v400 = vpack.c.b16 %v274, %v271
    %v401 = vpack.c.b16 %v278, %v275
    %v402 = vpack.c.b16 %v279, %v276
    %v403 = vpack.c.b16 %v280, %v277
    %v404 = vpack.c.b16 %v284, %v281
    %v405 = vpack.c.b16 %v285, %v282
    %v406 = vpack.c.b16 %v286, %v283
    %v407 = vpack.c.b16 %v290, %v287
    %v408 = vpack.c.b16 %v291, %v288
    %v409 = vpack.c.b16 %v292, %v289
    %v410 = vpack.c.b16 %v296, %v293
    %v411 = vpack.c.b16 %v297, %v294
    %v412 = vpack.c.b16 %v298, %v295
    %v413 = vpack.c.b16 %v302, %v299
    %v414 = vpack.c.b16 %v303, %v300
    %v415 = vpack.c.b16 %v304, %v301
    %v416 = vpack.c.b16 %v308, %v305
    %v417 = vpack.c.b16 %v309, %v306
    %v418 = vpack.c.b16 %v310, %v307
    %v419 = vpack.c.b16 %v314, %v311
    %v420 = vpack.c.b16 %v315, %v312
    %v421 = vpack.c.b16 %v316, %v313
    %v422 = vpack.c.b16 %v320, %v317
    %v423 = vpack.c.b16 %v321, %v318
    %v424 = vpack.c.b16 %v322, %v319
    %v425 = vpack.c.b16 %v326, %v323
    %v426 = vpack.c.b16 %v327, %v324
    %v427 = vpack.c.b16 %v328, %v325
    %v428 = vpack.c.b16 %v332, %v329
    %v429 = vpack.c.b16 %v333, %v330
    %v430 = vpack.c.b16 %v334, %v331
    %v431 = vpack.c.b16 %v338, %v335
    %v432 = vpack.c.b16 %v339, %v336
    %v433 = vpack.c.b16 %v340, %v337
    %v434 = vpack.c.b16 %v344, %v341
    %v435 = vpack.c.b16 %v345, %v342
    %v436 = vpack.c.b16 %v346, %v343
    %v437 = vpack.c.b16 %v350, %v347
    %v438 = vpack.c.b16 %v351, %v348
    %v439 = vpack.c.b16 %v352, %v349
    %v440 = vpack.c.b16 %v356, %v353
    %v441 = vpack.c.b16 %v357, %v354
    %v442 = vpack.c.b16 %v358, %v355
    %v443 = vpack.c.b16 %v362, %v359
    %v444 = vpack.c.b16 %v363, %v360
    %v445 = vpack.c.b16 %v364, %v361
    %v446 = vpack.c.b16 %v368, %v365
    %v447 = vpack.c.b16 %v369, %v366
    %v448 = vpack.c.b16 %v370, %v367
    %v449 = vpack.c.b16 %v374, %v371
    %v450 = vpack.c.b16 %v375, %v372
    %v451 = vpack.c.b16 %v376, %v373
    %v452 = vpack.c.b16 %v380, %v377
    %v453 = vpack.c.b16 %v381, %v378
    %v454 = vpack.c.b16 %v382, %v379
    %527 = vmatprep.subr.bf16.mxu0 %v405
    %528 = vmatpush1.bf16.msra.mxu0 %v404
    %529 = vmatprep.subr.bf16.mxu0 %v402
    %530 = vmatpush1.bf16.msra.mxu0 %v401
    %531 = vmatprep.subr.bf16.mxu0 %v399
    %532 = vmatpush1.bf16.msra.mxu0 %v398
    %533 = vmatprep.subr.bf16.mxu0 %v396
    %534 = vmatpush1.bf16.msra.mxu0 %v395
    %535 = vmatprep.subr.bf16.mxu0 %v393
    %536 = vmatpush1.bf16.msra.mxu0 %v392
    %537 = vmatprep.subr.bf16.mxu0 %v390
    %538 = vmatpush1.bf16.msra.mxu0 %v389
    %539 = vmatprep.subr.bf16.mxu0 %v387
    %540 = vmatpush1.bf16.msra.mxu0 %v386
    %541 = vmatprep.subr.bf16.mxu0 %v384
    %542 = vmatpush1.bf16.msra.mxu0 %v383
    %543 = vmatprep.subr.bf16.mxu0 %v429
    %544 = vmatpush2.bf16.msra.mxu0 %v428
    %545 = vmatprep.subr.bf16.mxu0 %v426
    %546 = vmatpush2.bf16.msra.mxu0 %v425
    %547 = vmatprep.subr.bf16.mxu0 %v423
    %548 = vmatpush2.bf16.msra.mxu0 %v422
    %549 = vmatprep.subr.bf16.mxu0 %v420
    %550 = vmatpush2.bf16.msra.mxu0 %v419
    %551 = vmatprep.subr.bf16.mxu0 %v417
    %552 = vmatpush2.bf16.msra.mxu0 %v416
    %553 = vmatprep.subr.bf16.mxu0 %v414
    %554 = vmatpush2.bf16.msra.mxu0 %v413
    %555 = vmatprep.subr.bf16.mxu0 %v411
    %556 = vmatpush2.bf16.msra.mxu0 %v410
    %557 = vmatprep.subr.bf16.mxu0 %v408
    %558 = vmatpush2.bf16.msra.mxu0 %v407
    %559 = vmatprep.mubr.bf16.mxu0 %v138
    %560 = vmatmul.mubr.bf16.gmra.mxu0 %v137
    %v561 = vpop.f32.mrf.mxu0
    %v562 = vadd.f32 0.0, %v561
    %v563 = vpop.f32.mrf.mxu0
    %v564 = vadd.f32 0.0, %v563
    %v565 = vpop.f32.mrf.mxu0
    %v566 = vadd.f32 0.0, %v565
    %v567 = vpop.f32.mrf.mxu0
    %v568 = vadd.f32 0.0, %v567
    %569 = vdwg.mxu0
    %570 = vmatprep.subr.bf16.mxu0 %v453
    %571 = vmatpush1.bf16.msra.mxu0 %v452
    %572 = vmatprep.subr.bf16.mxu0 %v450
    %573 = vmatpush1.bf16.msra.mxu0 %v449
    %574 = vmatprep.subr.bf16.mxu0 %v447
    %575 = vmatpush1.bf16.msra.mxu0 %v446
    %576 = vmatprep.subr.bf16.mxu0 %v444
    %577 = vmatpush1.bf16.msra.mxu0 %v443
    %578 = vmatprep.subr.bf16.mxu0 %v441
    %579 = vmatpush1.bf16.msra.mxu0 %v440
    %580 = vmatprep.subr.bf16.mxu0 %v438
    %581 = vmatpush1.bf16.msra.mxu0 %v437
    %582 = vmatprep.subr.bf16.mxu0 %v435
    %583 = vmatpush1.bf16.msra.mxu0 %v434
    %584 = vmatprep.subr.bf16.mxu0 %v432
    %585 = vmatpush1.bf16.msra.mxu0 %v431
    %586 = vmatprep.subr.bf16.mxu0 0
    %587 = vmatpush2.bf16.msra.mxu0 0
    %588 = vmatprep.subr.bf16.mxu0 0
    %589 = vmatpush2.bf16.msra.mxu0 0
    %590 = vmatprep.subr.bf16.mxu0 0
    %591 = vmatpush2.bf16.msra.mxu0 0
    %592 = vmatprep.subr.bf16.mxu0 0
    %593 = vmatpush2.bf16.msra.mxu0 0
    %594 = vmatprep.subr.bf16.mxu0 0
    %595 = vmatpush2.bf16.msra.mxu0 0
    %596 = vmatprep.subr.bf16.mxu0 0
    %597 = vmatpush2.bf16.msra.mxu0 0
    %598 = vmatprep.subr.bf16.mxu0 0
    %599 = vmatpush2.bf16.msra.mxu0 0
    %600 = vmatprep.subr.bf16.mxu0 0
    %601 = vmatpush2.bf16.msra.mxu0 0
    %602 = vmatprep.mubr.bf16.mxu0 0
    %603 = vmatmul.mubr.bf16.gmra.mxu0 %v139
    %v604 = vpop.f32.mrf.mxu0
    %v605 = vadd.f32 %v562, %v604
    %v606 = vpop.f32.mrf.mxu0
    %v607 = vadd.f32 %v564, %v606
    %v608 = vpop.f32.mrf.mxu0
    %v609 = vadd.f32 %v566, %v608
    %v610 = vpop.f32.mrf.mxu0
    %v611 = vadd.f32 %v568, %v610
    %612 = vdwg.mxu0
    %613 = vmatprep.subr.bf16.mxu0 0
    %614 = vmatpush1.bf16.msra.mxu0 %v406
    %615 = vmatprep.subr.bf16.mxu0 0
    %616 = vmatpush1.bf16.msra.mxu0 %v403
    %617 = vmatprep.subr.bf16.mxu0 0
    %618 = vmatpush1.bf16.msra.mxu0 %v400
    %619 = vmatprep.subr.bf16.mxu0 0
    %620 = vmatpush1.bf16.msra.mxu0 %v397
    %621 = vmatprep.subr.bf16.mxu0 0
    %622 = vmatpush1.bf16.msra.mxu0 %v394
    %623 = vmatprep.subr.bf16.mxu0 0
    %624 = vmatpush1.bf16.msra.mxu0 %v391
    %625 = vmatprep.subr.bf16.mxu0 0
    %626 = vmatpush1.bf16.msra.mxu0 %v388
    %627 = vmatprep.subr.bf16.mxu0 0
    %628 = vmatpush1.bf16.msra.mxu0 %v385
    %629 = vmatprep.subr.bf16.mxu0 0
    %630 = vmatpush2.bf16.msra.mxu0 %v430
    %631 = vmatprep.subr.bf16.mxu0 0
    %632 = vmatpush2.bf16.msra.mxu0 %v427
    %633 = vmatprep.subr.bf16.mxu0 0
    %634 = vmatpush2.bf16.msra.mxu0 %v424
    %635 = vmatprep.subr.bf16.mxu0 0
    %636 = vmatpush2.bf16.msra.mxu0 %v421
    %637 = vmatprep.subr.bf16.mxu0 0
    %638 = vmatpush2.bf16.msra.mxu0 %v418
    %639 = vmatprep.subr.bf16.mxu0 0
    %640 = vmatpush2.bf16.msra.mxu0 %v415
    %641 = vmatprep.subr.bf16.mxu0 0
    %642 = vmatpush2.bf16.msra.mxu0 %v412
    %643 = vmatprep.subr.bf16.mxu0 0
    %644 = vmatpush2.bf16.msra.mxu0 %v409
    %645 = vmatprep.mubr.bf16.mxu0 %v138
    %646 = vmatmul.mubr.bf16.gmra.mxu0 %v137
    %v647 = vpop.f32.mrf.mxu0
    %v648 = vadd.f32 0.0, %v647
    %v649 = vpop.f32.mrf.mxu0
    %v650 = vpop.f32.mrf.mxu0
    %v651 = vadd.f32 0.0, %v650
    %v652 = vpop.f32.mrf.mxu0
    %653 = vdwg.mxu0
    %654 = vmatprep.subr.bf16.mxu0 0
    %655 = vmatpush1.bf16.msra.mxu0 %v454
    %656 = vmatprep.subr.bf16.mxu0 0
    %657 = vmatpush1.bf16.msra.mxu0 %v451
    %658 = vmatprep.subr.bf16.mxu0 0
    %659 = vmatpush1.bf16.msra.mxu0 %v448
    %660 = vmatprep.subr.bf16.mxu0 0
    %661 = vmatpush1.bf16.msra.mxu0 %v445
    %662 = vmatprep.subr.bf16.mxu0 0
    %663 = vmatpush1.bf16.msra.mxu0 %v442
    %664 = vmatprep.subr.bf16.mxu0 0
    %665 = vmatpush1.bf16.msra.mxu0 %v439
    %666 = vmatprep.subr.bf16.mxu0 0
    %667 = vmatpush1.bf16.msra.mxu0 %v436
    %668 = vmatprep.subr.bf16.mxu0 0
    %669 = vmatpush1.bf16.msra.mxu0 %v433
    %670 = vmatprep.subr.bf16.mxu0 0
    %671 = vmatpush2.bf16.msra.mxu0 0
    %672 = vmatprep.subr.bf16.mxu0 0
    %673 = vmatpush2.bf16.msra.mxu0 0
    %674 = vmatprep.subr.bf16.mxu0 0
    %675 = vmatpush2.bf16.msra.mxu0 0
    %676 = vmatprep.subr.bf16.mxu0 0
    %677 = vmatpush2.bf16.msra.mxu0 0
    %678 = vmatprep.subr.bf16.mxu0 0
    %679 = vmatpush2.bf16.msra.mxu0 0
    %680 = vmatprep.subr.bf16.mxu0 0
    %681 = vmatpush2.bf16.msra.mxu0 0
    %682 = vmatprep.subr.bf16.mxu0 0
    %683 = vmatpush2.bf16.msra.mxu0 0
    %684 = vmatprep.subr.bf16.mxu0 0
    %685 = vmatpush2.bf16.msra.mxu0 0
    %686 = vmatprep.mubr.bf16.mxu0 0
    %687 = vmatmul.mubr.bf16.gmra.mxu0 %v139
    %v688 = vpop.f32.mrf.mxu0
    %v689 = vadd.f32 %v648, %v688
    %v690 = vpop.f32.mrf.mxu0
    %v691 = vpop.f32.mrf.mxu0
    %v692 = vadd.f32 %v651, %v691
    %v693 = vpop.f32.mrf.mxu0
    %694 = vdwg.mxu0
    %v695 = vpack.c.bf16 %v605, %v605
    %v696 = vpack.c.bf16 %v609, %v609
    %v697 = vpack.c.bf16 %v607, %v607
    %v698 = vpack.c.bf16 %v611, %v611
    %699 = vmatprep.subr.bf16.mxu0 0
    %700 = vmatpush1.bf16.xpose.msra.mxu0 0
    %701 = vmatprep.subr.bf16.mxu0 0
    %702 = vmatpush1.bf16.xpose.msra.mxu0 0
    %703 = vmatprep.subr.bf16.mxu0 0
    %704 = vmatpush1.bf16.xpose.msra.mxu0 0
    %705 = vmatprep.subr.bf16.mxu0 0
    %706 = vmatpush1.bf16.xpose.msra.mxu0 0
    %707 = vmatprep.subr.bf16.mxu0 0
    %708 = vmatpush1.bf16.xpose.msra.mxu0 0
    %709 = vmatprep.subr.bf16.mxu0 0
    %710 = vmatpush1.bf16.xpose.msra.mxu0 0
    %711 = vmatprep.subr.bf16.mxu0 0
    %712 = vmatpush1.bf16.xpose.msra.mxu0 0
    %713 = vmatprep.subr.bf16.mxu0 0
    %714 = vmatpush1.bf16.xpose.msra.mxu0 %v697
    %715 = vmatprep.subr.bf16.mxu0 0
    %716 = vmatpush2.bf16.xpose.msra.mxu0 0
    %717 = vmatprep.subr.bf16.mxu0 0
    %718 = vmatpush2.bf16.xpose.msra.mxu0 0
    %719 = vmatprep.subr.bf16.mxu0 0
    %720 = vmatpush2.bf16.xpose.msra.mxu0 0
    %721 = vmatprep.subr.bf16.mxu0 0
    %722 = vmatpush2.bf16.xpose.msra.mxu0 0
    %723 = vmatprep.subr.bf16.mxu0 0
    %724 = vmatpush2.bf16.xpose.msra.mxu0 0
    %725 = vmatprep.subr.bf16.mxu0 0
    %726 = vmatpush2.bf16.xpose.msra.mxu0 0
    %727 = vmatprep.subr.bf16.mxu0 0
    %728 = vmatpush2.bf16.xpose.msra.mxu0 0
    %729 = vmatprep.subr.bf16.mxu0 0
    %730 = vmatpush2.bf16.xpose.msra.mxu0 0
    %731 = vmatprep.mubr.bf16.mxu0 0
    %732 = vmatmul.mubr.bf16.gmra.mxu0 %v695
    %v733 = vpop.f32.mrf.mxu0
    %v734 = vadd.f32 0.0, %v733
    %v735 = vpop.f32.mrf.mxu0
    %v736 = vpop.f32.mrf.mxu0
    %v737 = vpop.f32.mrf.mxu0
    %738 = vdwg.mxu0
    %739 = vmatprep.subr.bf16.mxu0 0
    %740 = vmatpush1.bf16.xpose.msra.mxu0 0
    %741 = vmatprep.subr.bf16.mxu0 0
    %742 = vmatpush1.bf16.xpose.msra.mxu0 0
    %743 = vmatprep.subr.bf16.mxu0 0
    %744 = vmatpush1.bf16.xpose.msra.mxu0 0
    %745 = vmatprep.subr.bf16.mxu0 0
    %746 = vmatpush1.bf16.xpose.msra.mxu0 0
    %747 = vmatprep.subr.bf16.mxu0 0
    %748 = vmatpush1.bf16.xpose.msra.mxu0 0
    %749 = vmatprep.subr.bf16.mxu0 0
    %750 = vmatpush1.bf16.xpose.msra.mxu0 0
    %751 = vmatprep.subr.bf16.mxu0 0
    %752 = vmatpush1.bf16.xpose.msra.mxu0 0
    %753 = vmatprep.subr.bf16.mxu0 0
    %754 = vmatpush1.bf16.xpose.msra.mxu0 %v698
    %755 = vmatprep.subr.bf16.mxu0 0
    %756 = vmatpush2.bf16.xpose.msra.mxu0 0
    %757 = vmatprep.subr.bf16.mxu0 0
    %758 = vmatpush2.bf16.xpose.msra.mxu0 0
    %759 = vmatprep.subr.bf16.mxu0 0
    %760 = vmatpush2.bf16.xpose.msra.mxu0 0
    %761 = vmatprep.subr.bf16.mxu0 0
    %762 = vmatpush2.bf16.xpose.msra.mxu0 0
    %763 = vmatprep.subr.bf16.mxu0 0
    %764 = vmatpush2.bf16.xpose.msra.mxu0 0
    %765 = vmatprep.subr.bf16.mxu0 0
    %766 = vmatpush2.bf16.xpose.msra.mxu0 0
    %767 = vmatprep.subr.bf16.mxu0 0
    %768 = vmatpush2.bf16.xpose.msra.mxu0 0
    %769 = vmatprep.subr.bf16.mxu0 0
    %770 = vmatpush2.bf16.xpose.msra.mxu0 0
    %771 = vmatprep.mubr.bf16.mxu0 0
    %772 = vmatmul.mubr.bf16.gmra.mxu0 %v696
    %v773 = vpop.f32.mrf.mxu0
    %v774 = vadd.f32 0.0, %v773
    %v775 = vpop.f32.mrf.mxu0
    %v776 = vpop.f32.mrf.mxu0
    %v777 = vpop.f32.mrf.mxu0
    %778 = vdwg.mxu0
    %v779 = vmul.f32 %v734, 0.05103104
    %v780 = vmul.f32 %v774, 0.05103104
    %vm781 = vcmask 64512
    %v782 = vsel %vm781, %v779, -inf
    %783 = vmax.xlane.f32.xlu0 %v782
    %v784 = vpop.xlane.xlu0 %783
    %v785 = vsel %vm781, %v780, -inf
    %786 = vmax.xlane.f32.xlu0 %v785
    %v787 = vpop.xlane.xlu0 %786
    %v788 = vsub.f32 %v779, %v784
    %v789 = vsub.f32 %v780, %v787
    %v790 = vmul.f32 %v788, 1.442695
    %v791 = vpow.pop %v790
    %v792 = vmul.f32 %v789, 1.442695
    %v793 = vpow.pop %v792
    %v794 = vsel %vm781, %v791, 0.0
    %795 = vadd.xlane.f32.xlu0 %v794
    %v796 = vpop.xlane.xlu0 %795
    %v797 = vsel %vm781, %v793, 0.0
    %798 = vadd.xlane.f32.xlu0 %v797
    %v799 = vpop.xlane.xlu0 %798
    %v800 = vrcp.pop %v796
    %v801 = vrcp.pop %v799
    %v802 = vmul.f32 %v791, %v800
    %v803 = vmul.f32 %v793, %v801
    %v804 = vpack.c.bf16 %v802, %v802
    %v805 = vpack.c.bf16 %v803, %v803
    %v806 = vpack.c.bf16 %v689, %v689
    %v807 = vpack.c.bf16 %v692, %v692
    %v809 = vsel %vm781, %v804, 0
    %vm811 = vcmask 1043456
    %v813 = vsel %vm811, %v806, 0
    %815 = vmatprep.subr.bf16.mxu0 0
    %816 = vmatpush1.bf16.msra.mxu0 0
    %817 = vmatprep.subr.bf16.mxu0 0
    %818 = vmatpush1.bf16.msra.mxu0 0
    %819 = vmatprep.subr.bf16.mxu0 0
    %820 = vmatpush1.bf16.msra.mxu0 0
    %821 = vmatprep.subr.bf16.mxu0 0
    %822 = vmatpush1.bf16.msra.mxu0 0
    %823 = vmatprep.subr.bf16.mxu0 0
    %824 = vmatpush1.bf16.msra.mxu0 0
    %825 = vmatprep.subr.bf16.mxu0 0
    %826 = vmatpush1.bf16.msra.mxu0 0
    %827 = vmatprep.subr.bf16.mxu0 0
    %828 = vmatpush1.bf16.msra.mxu0 0
    %829 = vmatprep.subr.bf16.mxu0 0
    %830 = vmatpush1.bf16.msra.mxu0 %v813
    %831 = vmatprep.subr.bf16.mxu0 0
    %832 = vmatpush2.bf16.msra.mxu0 0
    %833 = vmatprep.subr.bf16.mxu0 0
    %834 = vmatpush2.bf16.msra.mxu0 0
    %835 = vmatprep.subr.bf16.mxu0 0
    %836 = vmatpush2.bf16.msra.mxu0 0
    %837 = vmatprep.subr.bf16.mxu0 0
    %838 = vmatpush2.bf16.msra.mxu0 0
    %839 = vmatprep.subr.bf16.mxu0 0
    %840 = vmatpush2.bf16.msra.mxu0 0
    %841 = vmatprep.subr.bf16.mxu0 0
    %842 = vmatpush2.bf16.msra.mxu0 0
    %843 = vmatprep.subr.bf16.mxu0 0
    %844 = vmatpush2.bf16.msra.mxu0 0
    %845 = vmatprep.subr.bf16.mxu0 0
    %846 = vmatpush2.bf16.msra.mxu0 0
    %847 = vmatprep.mubr.bf16.mxu0 0
    %848 = vmatmul.mubr.bf16.gmra.mxu0 %v809
    %v849 = vpop.f32.mrf.mxu0
    %v850 = vadd.f32 0.0, %v849
    %v851 = vpop.f32.mrf.mxu0
    %v852 = vpop.f32.mrf.mxu0
    %v853 = vpop.f32.mrf.mxu0
    %854 = vdwg.mxu0
    %v856 = vsel %vm781, %v805, 0
    %v859 = vsel %vm811, %v807, 0
    %861 = vmatprep.subr.bf16.mxu0 0
    %862 = vmatpush1.bf16.msra.mxu0 0
    %863 = vmatprep.subr.bf16.mxu0 0
    %864 = vmatpush1.bf16.msra.mxu0 0
    %865 = vmatprep.subr.bf16.mxu0 0
    %866 = vmatpush1.bf16.msra.mxu0 0
    %867 = vmatprep.subr.bf16.mxu0 0
    %868 = vmatpush1.bf16.msra.mxu0 0
    %869 = vmatprep.subr.bf16.mxu0 0
    %870 = vmatpush1.bf16.msra.mxu0 0
    %871 = vmatprep.subr.bf16.mxu0 0
    %872 = vmatpush1.bf16.msra.mxu0 0
    %873 = vmatprep.subr.bf16.mxu0 0
    %874 = vmatpush1.bf16.msra.mxu0 0
    %875 = vmatprep.subr.bf16.mxu0 0
    %876 = vmatpush1.bf16.msra.mxu0 %v859
    %877 = vmatprep.subr.bf16.mxu0 0
    %878 = vmatpush2.bf16.msra.mxu0 0
    %879 = vmatprep.subr.bf16.mxu0 0
    %880 = vmatpush2.bf16.msra.mxu0 0
    %881 = vmatprep.subr.bf16.mxu0 0
    %882 = vmatpush2.bf16.msra.mxu0 0
    %883 = vmatprep.subr.bf16.mxu0 0
    %884 = vmatpush2.bf16.msra.mxu0 0
    %885 = vmatprep.subr.bf16.mxu0 0
    %886 = vmatpush2.bf16.msra.mxu0 0
    %887 = vmatprep.subr.bf16.mxu0 0
    %888 = vmatpush2.bf16.msra.mxu0 0
    %889 = vmatprep.subr.bf16.mxu0 0
    %890 = vmatpush2.bf16.msra.mxu0 0
    %891 = vmatprep.subr.bf16.mxu0 0
    %892 = vmatpush2.bf16.msra.mxu0 0
    %893 = vmatprep.mubr.bf16.mxu0 0
    %894 = vmatmul.mubr.bf16.gmra.mxu0 %v856
    %v895 = vpop.f32.mrf.mxu0
    %v896 = vadd.f32 0.0, %v895
    %v897 = vpop.f32.mrf.mxu0
    %v898 = vpop.f32.mrf.mxu0
    %v899 = vpop.f32.mrf.mxu0
    %900 = vdwg.mxu0
    %vm901 = vcmask 523264
    %902 = vst.msk [vmem:[#allocation5] sm:$0xff] %vm901, %v850
    %903 = vst.msk [vmem:[#allocation5 + $0x8] sm:$0xff] %vm901, %v896
    // Predicated region
    $region14: #{head_forward.1} parent=1 // pred_check
      _
    $region15: #{head_forward.1} parent=1 // pred_check_branch
      %905 = sbr.rel (0) target = $region17
    $region16: #{head_forward.1} parent=1 // pred_region
      %s907 = ssub.s32 256, 256
      %908 = vsyncadd [#allocation4], %s907
      %s909 = sshll.u32 [#allocation5], 4
      %s910 = int_to_ptr.vmem [resolvable:$true] %s909
      %915 = dma.vmem_to_hbm [thread:$0]  %s910, 256, %s2, [#allocation4], 128, 128, 8
    $region17: #{head_forward.1} parent=1 // pred_fallthru
      _
    // Predicated region
    $region18: #{head_forward.1} parent=1 // pred_check
      _
    $region19: #{head_forward.1} parent=1 // pred_check_branch
      %917 = sbr.rel (0) target = $region21
    $region20: #{head_forward.1} parent=1 // pred_region
      %918 = dma.done [#allocation4], 256
    $region21: #{head_forward.1} parent=1 // pred_fallthru
      _
    %919 = vsyncpa [#allocation3], 1
    %920 = vsyncpa [#allocation4], 1

</llo_original>
